<compile_context>
chip_gen: v7x
topology: tpu7x:2x2x1
jax: 0.10.0
libtpu: 0.0.40
codegen_flags: <defaults>
</compile_context>

<pallas_src>
import jax
import jax.numpy as jnp
from jax.experimental import pallas as pl
from jax.experimental.pallas import tpu as pltpu

_LANES = 128

# Per-tile row cap: 4096 rows * 128 lanes * 4 B = 2 MiB per f32 tile; with the
# 3 streams (2 in + 1 out) double-buffered the VMEM footprint is ~12 MiB, which
# fits v5e's 16 MiB default scoped VMEM and is well inside v6e/v7x's 32 MiB.
_MAX_BLOCK_ROWS = 4096

# If the whole 3-stream problem fits in ~6 MiB of VMEM, run one grid step.
_SINGLE_BLOCK_BYTES = 6 * 1024 * 1024


def _add_kernel(a_ref, b_ref, o_ref):
    o_ref[...] = a_ref[...] + b_ref[...]


def _round_up(x, m):
    return ((x + m - 1) // m) * m


def _pallas_add_2d(a2, b2, rows):
    """Add two (rows, 128) lane-dense slabs with a pipelined Pallas kernel."""
    itemsize = jnp.dtype(a2.dtype).itemsize
    n = rows * _LANES

    if 3 * n * itemsize <= _SINGLE_BLOCK_BYTES:
        # Single grid step covering the whole slab.  A block equal to the full
        # array dim is legal even when `rows` is not a multiple of 8, so this
        # path has no masked partial blocks and no per-step overhead.
        br = rows
        num_blocks = 1
    else:
        # Multi-step: balance rows across an even number of blocks so the two
        # TensorCores on v7x (sharded via the "parallel" axis) get equal work;
        # keep blocks 8-aligned so vld/vst are unmasked, and the tile under
        # the per-generation VMEM cap.
        nb = pl.cdiv(rows, _MAX_BLOCK_ROWS)
        if nb % 2:
            nb += 1
        br = min(_round_up(pl.cdiv(rows, nb), 8), _MAX_BLOCK_ROWS)
        assert br % 8 == 0
        num_blocks = pl.cdiv(rows, br)

    cost = pl.CostEstimate(
        flops=n, transcendentals=0, bytes_accessed=3 * n * itemsize)

    return pl.pallas_call(
        _add_kernel,
        out_shape=jax.ShapeDtypeStruct((rows, _LANES), a2.dtype),
        grid=(num_blocks,),
        in_specs=[
            pl.BlockSpec((br, _LANES), lambda i: (i, 0)),
            pl.BlockSpec((br, _LANES), lambda i: (i, 0)),
        ],
        out_specs=pl.BlockSpec((br, _LANES), lambda i: (i, 0)),
        compiler_params=pltpu.CompilerParams(
            dimension_semantics=("parallel",)),
        cost_estimate=cost,
    )(a2, b2)


def pallas_add(x139, x147):
    assert x139.shape == x147.shape and x139.dtype == x147.dtype
    orig_shape = x139.shape
    n = x139.size

    rows = n // _LANES
    tail = n - rows * _LANES

    if rows == 0:
        # Tiny tensor: a kernel launch costs more than the add itself.
        return x139 + x147

    a_flat = jnp.ravel(x139)
    b_flat = jnp.ravel(x147)

    if tail == 0:
        out2 = _pallas_add_2d(a_flat.reshape(rows, _LANES),
                              b_flat.reshape(rows, _LANES), rows)
        return out2.reshape(orig_shape)

    # Misaligned flat size: kernel on the 128-aligned prefix, tiny (<128 elem)
    # tail in plain JAX.  Avoids the extra full HBM round trip of jnp.pad.
    main = rows * _LANES
    out_main = _pallas_add_2d(a_flat[:main].reshape(rows, _LANES),
                              b_flat[:main].reshape(rows, _LANES), rows)
    out_tail = a_flat[main:] + b_flat[main:]
    return jnp.concatenate([out_main.reshape(-1), out_tail]).reshape(orig_shape)


if __name__ == "__main__":
    key = jax.random.PRNGKey(0)
    k1, k2 = jax.random.split(key)
    # Real module shape: NCHW (1, 1344, 14, 14); flat size 263424 = 2058 * 128
    # (lane-aligned), ~1 MiB per f32 input -> single-block kernel path.
    shape = (1, 1344, 14, 14)
    x139 = jax.random.normal(k1, shape, dtype=jnp.float32)
    x147 = jax.random.normal(k2, shape, dtype=jnp.float32)

    out = pallas_add(x139, x147)
    out = jax.block_until_ready(out)

    # Correctness check against plain JAX reference.
    ref = x139 + x147
    assert out.shape == ref.shape
    assert out.dtype == ref.dtype
    assert jnp.allclose(out, ref, atol=1e-6, rtol=1e-6)

    print("KERNEL_OK")
</pallas_src>

<mosaic_0001>
module attributes {stable_mosaic.version = 11 : i64} {
  func.func @_add_kernel(%arg0: i32, %arg1: memref<2058x128xf32, #tpu.memory_space<vmem>>, %arg2: memref<2058x128xf32, #tpu.memory_space<vmem>>, %arg3: memref<2058x128xf32, #tpu.memory_space<vmem>>) attributes {dimension_semantics = [#tpu.dimension_semantics<parallel>], iteration_bounds = array<i64: 1>, scalar_prefetch = 0 : i64, scratch_operands = 0 : i64, tpu.core_type = #tpu.core_type<tc>, window_params = [{transform_indices = @transform_0, window_bounds = array<i64: 2058, 128>}, {transform_indices = @transform_1, window_bounds = array<i64: 2058, 128>}, {transform_indices = @transform_2, window_bounds = array<i64: 2058, 128>}]} {
    %c0 = arith.constant 0 : index
    %c0_0 = arith.constant 0 : index
    %0 = vector.load %arg1[%c0, %c0_0] : memref<2058x128xf32, #tpu.memory_space<vmem>>, vector<2058x128xf32>
    %c0_1 = arith.constant 0 : index
    %c0_2 = arith.constant 0 : index
    %1 = vector.load %arg2[%c0_1, %c0_2] : memref<2058x128xf32, #tpu.memory_space<vmem>>, vector<2058x128xf32>
    %2 = arith.addf %0, %1 : vector<2058x128xf32>
    %c0_3 = arith.constant 0 : index
    %c0_4 = arith.constant 0 : index
    %3 = vector.load %arg3[%c0_3, %c0_4] : memref<2058x128xf32, #tpu.memory_space<vmem>>, vector<2058x128xf32>
    tpu.vector_store %arg3[%c0_3, %c0_4], %2 {strides = array<i32>} : memref<2058x128xf32, #tpu.memory_space<vmem>>, vector<2058x128xf32>,
    return
  }
  func.func @transform_0(%arg0: i32) -> (i32, i32) {
    %c0_i32 = arith.constant 0 : i32
    %c0_i32_0 = arith.constant 0 : i32
    return %arg0, %c0_i32 : i32, i32
  }
  func.func @transform_1(%arg0: i32) -> (i32, i32) {
    %c0_i32 = arith.constant 0 : i32
    %c0_i32_0 = arith.constant 0 : i32
    return %arg0, %c0_i32 : i32, i32
  }
  func.func @transform_2(%arg0: i32) -> (i32, i32) {
    %c0_i32 = arith.constant 0 : i32
    %c0_i32_0 = arith.constant 0 : i32
    return %arg0, %c0_i32 : i32, i32
  }
}

</mosaic_0001>

<llo_original>
// kernel: tpu_custom_call.1
$region0: #{tpu_custom_call.1}
  #allocation0 [shape = 'u32[]', space=smem, size = 0x4, offset = 0x4, fixed_abs, tag = 'smem constant byte address 0x4 - core index']
  #allocation1 [shape = 'u32[144,128]{1,0:T(1,128)}', space=vmem, size = 0x12000, scoped, tag = 'internal scratch']
  %s0 = inlined_call_operand.hbm [shape: f32[2058,128], index: 0, kind: input, shape index: {}]
  %s1 = inlined_call_operand.hbm [shape: f32[2058,128], index: 1, kind: input, shape index: {}]
  %s2 = inlined_call_operand.hbm [shape: f32[2058,128], index: 2, kind: output, shape index: {}]
  %s3 = sld [smem:[#allocation0]]
  $region26: #{tpu_custom_call.1} parent=0
    _
  %s5 = ssub.s32 1, %s3
  %s6 = scalar_select 0, %s5, %s3
  $region1: #{tpu_custom_call.1} parent=0
    #allocation2 [shape = 'u8[1056768]{0}', space=vmem, size = 0x102000, scoped, tag = 'input window, operand 0, single buffered']
    #allocation3 [shape = 's32[1]{0}', space=sflag, size = 0x4, scoped, tag = 'scoped memory for tpu_custom_call.1']
    #allocation4 [shape = 's32[1]{0}', space=sflag, size = 0x4, scoped, tag = 'scoped memory for tpu_custom_call.1']
    #allocation5 [shape = 'u8[1056768]{0}', space=vmem, size = 0x102000, scoped, tag = 'input window, operand 1, single buffered']
    #allocation6 [shape = 's32[1]{0}', space=sflag, size = 0x4, scoped, tag = 'scoped memory for tpu_custom_call.1']
    #allocation7 [shape = 'u8[1056768]{0}', space=vmem, size = 0x102000, scoped, tag = 'output window, operand 0, single buffered']
    %7 = vsyncpa [#allocation3], 0
    %8 = vsyncpa [#allocation6], 0
    %9 = vsyncpa [#allocation4], 0
    // Predicated region
    $region2: #{tpu_custom_call.1} parent=1 // pred_check
      _
    $region3: #{tpu_custom_call.1} parent=1 // pred_check_branch
      %11 = sbr.rel (0) target = $region5
    $region4: #{tpu_custom_call.1} parent=1 // pred_region
      %s13 = ssub.s32 33024, 33024
      %14 = vsyncadd [#allocation3], %s13
      %s15 = sshll.u32 [#allocation2], 4
      %s16 = int_to_ptr.vmem [resolvable:$true] %s15
      %21 = dma.hbm_to_vmem [thread:$0]  %s0, 33024, %s16, [#allocation3], 128, 128, 8
    $region5: #{tpu_custom_call.1} parent=1 // pred_fallthru
      _
    // Predicated region
    $region6: #{tpu_custom_call.1} parent=1 // pred_check
      _
    $region7: #{tpu_custom_call.1} parent=1 // pred_check_branch
      %23 = sbr.rel (0) target = $region9
    $region8: #{tpu_custom_call.1} parent=1 // pred_region
      %s25 = ssub.s32 33024, 33024
      %26 = vsyncadd [#allocation6], %s25
      %s27 = sshll.u32 [#allocation5], 4
      %s28 = int_to_ptr.vmem [resolvable:$true] %s27
      %33 = dma.hbm_to_vmem [thread:$0]  %s1, 33024, %s28, [#allocation6], 128, 128, 8
    $region9: #{tpu_custom_call.1} parent=1 // pred_fallthru
      _
    // Predicated region
    $region10: #{tpu_custom_call.1} parent=1 // pred_check
      _
    $region11: #{tpu_custom_call.1} parent=1 // pred_check_branch
      %35 = sbr.rel (0) target = $region13
    $region12: #{tpu_custom_call.1} parent=1 // pred_region
      %36 = dma.done [#allocation3], 33024
    $region13: #{tpu_custom_call.1} parent=1 // pred_fallthru
      _
    // Predicated region
    $region14: #{tpu_custom_call.1} parent=1 // pred_check
      _
    $region15: #{tpu_custom_call.1} parent=1 // pred_check_branch
      %38 = sbr.rel (0) target = $region17
    $region16: #{tpu_custom_call.1} parent=1 // pred_region
      %39 = dma.done [#allocation6], 33024
    $region17: #{tpu_custom_call.1} parent=1 // pred_fallthru
      _
    %v40 = vld [vmem:[#allocation2] sm:$0xff]
    %v41 = vld [vmem:[#allocation2 + $0x8] sm:$0xff]
    %v42 = vld [vmem:[#allocation2 + $0x10] sm:$0xff]
    %v43 = vld [vmem:[#allocation2 + $0x18] sm:$0xff]
    %v44 = vld [vmem:[#allocation2 + $0x20] sm:$0xff]
    %v45 = vld [vmem:[#allocation2 + $0x28] sm:$0xff]
    %v46 = vld [vmem:[#allocation2 + $0x30] sm:$0xff]
    %v47 = vld [vmem:[#allocation2 + $0x38] sm:$0xff]
    %v48 = vld [vmem:[#allocation2 + $0x40] sm:$0xff]
    %v49 = vld [vmem:[#allocation2 + $0x48] sm:$0xff]
    %v50 = vld [vmem:[#allocation2 + $0x50] sm:$0xff]
    %v51 = vld [vmem:[#allocation2 + $0x58] sm:$0xff]
    %v52 = vld [vmem:[#allocation2 + $0x60] sm:$0xff]
    %v53 = vld [vmem:[#allocation2 + $0x68] sm:$0xff]
    %v54 = vld [vmem:[#allocation2 + $0x70] sm:$0xff]
    %v55 = vld [vmem:[#allocation2 + $0x78] sm:$0xff]
    %v56 = vld [vmem:[#allocation2 + $0x80] sm:$0xff]
    %v57 = vld [vmem:[#allocation2 + $0x88] sm:$0xff]
    %v58 = vld [vmem:[#allocation2 + $0x90] sm:$0xff]
    %v59 = vld [vmem:[#allocation2 + $0x98] sm:$0xff]
    %v60 = vld [vmem:[#allocation2 + $0xa0] sm:$0xff]
    %v61 = vld [vmem:[#allocation2 + $0xa8] sm:$0xff]
    %v62 = vld [vmem:[#allocation2 + $0xb0] sm:$0xff]
    %v63 = vld [vmem:[#allocation2 + $0xb8] sm:$0xff]
    %v64 = vld [vmem:[#allocation2 + $0xc0] sm:$0xff]
    %v65 = vld [vmem:[#allocation2 + $0xc8] sm:$0xff]
    %v66 = vld [vmem:[#allocation2 + $0xd0] sm:$0xff]
    %v67 = vld [vmem:[#allocation2 + $0xd8] sm:$0xff]
    %v68 = vld [vmem:[#allocation2 + $0xe0] sm:$0xff]
    %v69 = vld [vmem:[#allocation2 + $0xe8] sm:$0xff]
    %v70 = vld [vmem:[#allocation2 + $0xf0] sm:$0xff]
    %v71 = vld [vmem:[#allocation2 + $0xf8] sm:$0xff]
    %v72 = vld [vmem:[#allocation2 + $0x100] sm:$0xff]
    %v73 = vld [vmem:[#allocation2 + $0x108] sm:$0xff]
    %v74 = vld [vmem:[#allocation2 + $0x110] sm:$0xff]
    %v75 = vld [vmem:[#allocation2 + $0x118] sm:$0xff]
    %v76 = vld [vmem:[#allocation2 + $0x120] sm:$0xff]
    %v77 = vld [vmem:[#allocation2 + $0x128] sm:$0xff]
    %v78 = vld [vmem:[#allocation2 + $0x130] sm:$0xff]
    %v79 = vld [vmem:[#allocation2 + $0x138] sm:$0xff]
    %v80 = vld [vmem:[#allocation2 + $0x140] sm:$0xff]
    %v81 = vld [vmem:[#allocation2 + $0x148] sm:$0xff]
    %v82 = vld [vmem:[#allocation2 + $0x150] sm:$0xff]
    %v83 = vld [vmem:[#allocation2 + $0x158] sm:$0xff]
    %v84 = vld [vmem:[#allocation2 + $0x160] sm:$0xff]
    %v85 = vld [vmem:[#allocation2 + $0x168] sm:$0xff]
    %v86 = vld [vmem:[#allocation2 + $0x170] sm:$0xff]
    %v87 = vld [vmem:[#allocation2 + $0x178] sm:$0xff]
    %v88 = vld [vmem:[#allocation2 + $0x180] sm:$0xff]
    %v89 = vld [vmem:[#allocation2 + $0x188] sm:$0xff]
    %v90 = vld [vmem:[#allocation2 + $0x190] sm:$0xff]
    %v91 = vld [vmem:[#allocation2 + $0x198] sm:$0xff]
    %v92 = vld [vmem:[#allocation2 + $0x1a0] sm:$0xff]
    %v93 = vld [vmem:[#allocation2 + $0x1a8] sm:$0xff]
    %v94 = vld [vmem:[#allocation2 + $0x1b0] sm:$0xff]
    %v95 = vld [vmem:[#allocation2 + $0x1b8] sm:$0xff]
    %v96 = vld [vmem:[#allocation2 + $0x1c0] sm:$0xff]
    %v97 = vld [vmem:[#allocation2 + $0x1c8] sm:$0xff]
    %v98 = vld [vmem:[#allocation2 + $0x1d0] sm:$0xff]
    %v99 = vld [vmem:[#allocation2 + $0x1d8] sm:$0xff]
    %v100 = vld [vmem:[#allocation2 + $0x1e0] sm:$0xff]
    %v101 = vld [vmem:[#allocation2 + $0x1e8] sm:$0xff]
    %v102 = vld [vmem:[#allocation2 + $0x1f0] sm:$0xff]
    %v103 = vld [vmem:[#allocation2 + $0x1f8] sm:$0xff]
    %v104 = vld [vmem:[#allocation2 + $0x200] sm:$0xff]
    %v105 = vld [vmem:[#allocation2 + $0x208] sm:$0xff]
    %v106 = vld [vmem:[#allocation2 + $0x210] sm:$0xff]
    %v107 = vld [vmem:[#allocation2 + $0x218] sm:$0xff]
    %v108 = vld [vmem:[#allocation2 + $0x220] sm:$0xff]
    %v109 = vld [vmem:[#allocation2 + $0x228] sm:$0xff]
    %v110 = vld [vmem:[#allocation2 + $0x230] sm:$0xff]
    %v111 = vld [vmem:[#allocation2 + $0x238] sm:$0xff]
    %v112 = vld [vmem:[#allocation2 + $0x240] sm:$0xff]
    %v113 = vld [vmem:[#allocation2 + $0x248] sm:$0xff]
    %v114 = vld [vmem:[#allocation2 + $0x250] sm:$0xff]
    %v115 = vld [vmem:[#allocation2 + $0x258] sm:$0xff]
    %v116 = vld [vmem:[#allocation2 + $0x260] sm:$0xff]
    %v117 = vld [vmem:[#allocation2 + $0x268] sm:$0xff]
    %v118 = vld [vmem:[#allocation2 + $0x270] sm:$0xff]
    %v119 = vld [vmem:[#allocation2 + $0x278] sm:$0xff]
    %v120 = vld [vmem:[#allocation2 + $0x280] sm:$0xff]
    %v121 = vld [vmem:[#allocation2 + $0x288] sm:$0xff]
    %v122 = vld [vmem:[#allocation2 + $0x290] sm:$0xff]
    %v123 = vld [vmem:[#allocation2 + $0x298] sm:$0xff]
    %v124 = vld [vmem:[#allocation2 + $0x2a0] sm:$0xff]
    %v125 = vld [vmem:[#allocation2 + $0x2a8] sm:$0xff]
    %v126 = vld [vmem:[#allocation2 + $0x2b0] sm:$0xff]
    %v127 = vld [vmem:[#allocation2 + $0x2b8] sm:$0xff]
    %v128 = vld [vmem:[#allocation2 + $0x2c0] sm:$0xff]
    %v129 = vld [vmem:[#allocation2 + $0x2c8] sm:$0xff]
    %v130 = vld [vmem:[#allocation2 + $0x2d0] sm:$0xff]
    %v131 = vld [vmem:[#allocation2 + $0x2d8] sm:$0xff]
    %v132 = vld [vmem:[#allocation2 + $0x2e0] sm:$0xff]
    %v133 = vld [vmem:[#allocation2 + $0x2e8] sm:$0xff]
    %v134 = vld [vmem:[#allocation2 + $0x2f0] sm:$0xff]
    %v135 = vld [vmem:[#allocation2 + $0x2f8] sm:$0xff]
    %v136 = vld [vmem:[#allocation2 + $0x300] sm:$0xff]
    %v137 = vld [vmem:[#allocation2 + $0x308] sm:$0xff]
    %v138 = vld [vmem:[#allocation2 + $0x310] sm:$0xff]
    %v139 = vld [vmem:[#allocation2 + $0x318] sm:$0xff]
    %v140 = vld [vmem:[#allocation2 + $0x320] sm:$0xff]
    %v141 = vld [vmem:[#allocation2 + $0x328] sm:$0xff]
    %v142 = vld [vmem:[#allocation2 + $0x330] sm:$0xff]
    %v143 = vld [vmem:[#allocation2 + $0x338] sm:$0xff]
    %v144 = vld [vmem:[#allocation2 + $0x340] sm:$0xff]
    %v145 = vld [vmem:[#allocation2 + $0x348] sm:$0xff]
    %v146 = vld [vmem:[#allocation2 + $0x350] sm:$0xff]
    %v147 = vld [vmem:[#allocation2 + $0x358] sm:$0xff]
    %v148 = vld [vmem:[#allocation2 + $0x360] sm:$0xff]
    %v149 = vld [vmem:[#allocation2 + $0x368] sm:$0xff]
    %v150 = vld [vmem:[#allocation2 + $0x370] sm:$0xff]
    %v151 = vld [vmem:[#allocation2 + $0x378] sm:$0xff]
    %v152 = vld [vmem:[#allocation2 + $0x380] sm:$0xff]
    %v153 = vld [vmem:[#allocation2 + $0x388] sm:$0xff]
    %v154 = vld [vmem:[#allocation2 + $0x390] sm:$0xff]
    %v155 = vld [vmem:[#allocation2 + $0x398] sm:$0xff]
    %v156 = vld [vmem:[#allocation2 + $0x3a0] sm:$0xff]
    %v157 = vld [vmem:[#allocation2 + $0x3a8] sm:$0xff]
    %v158 = vld [vmem:[#allocation2 + $0x3b0] sm:$0xff]
    %v159 = vld [vmem:[#allocation2 + $0x3b8] sm:$0xff]
    %v160 = vld [vmem:[#allocation2 + $0x3c0] sm:$0xff]
    %v161 = vld [vmem:[#allocation2 + $0x3c8] sm:$0xff]
    %v162 = vld [vmem:[#allocation2 + $0x3d0] sm:$0xff]
    %v163 = vld [vmem:[#allocation2 + $0x3d8] sm:$0xff]
    %v164 = vld [vmem:[#allocation2 + $0x3e0] sm:$0xff]
    %v165 = vld [vmem:[#allocation2 + $0x3e8] sm:$0xff]
    %v166 = vld [vmem:[#allocation2 + $0x3f0] sm:$0xff]
    %v167 = vld [vmem:[#allocation2 + $0x3f8] sm:$0xff]
    %v168 = vld [vmem:[#allocation2 + $0x400] sm:$0xff]
    %v169 = vld [vmem:[#allocation2 + $0x408] sm:$0xff]
    %v170 = vld [vmem:[#allocation2 + $0x410] sm:$0xff]
    %v171 = vld [vmem:[#allocation2 + $0x418] sm:$0xff]
    %v172 = vld [vmem:[#allocation2 + $0x420] sm:$0xff]
    %v173 = vld [vmem:[#allocation2 + $0x428] sm:$0xff]
    %v174 = vld [vmem:[#allocation2 + $0x430] sm:$0xff]
    %v175 = vld [vmem:[#allocation2 + $0x438] sm:$0xff]
    %v176 = vld [vmem:[#allocation2 + $0x440] sm:$0xff]
    %v177 = vld [vmem:[#allocation2 + $0x448] sm:$0xff]
    %v178 = vld [vmem:[#allocation2 + $0x450] sm:$0xff]
    %v179 = vld [vmem:[#allocation2 + $0x458] sm:$0xff]
    %v180 = vld [vmem:[#allocation2 + $0x460] sm:$0xff]
    %v181 = vld [vmem:[#allocation2 + $0x468] sm:$0xff]
    %v182 = vld [vmem:[#allocation2 + $0x470] sm:$0xff]
    %v183 = vld [vmem:[#allocation2 + $0x478] sm:$0xff]
    %v184 = vld [vmem:[#allocation2 + $0x480] sm:$0xff]
    %v185 = vld [vmem:[#allocation2 + $0x488] sm:$0xff]
    %v186 = vld [vmem:[#allocation2 + $0x490] sm:$0xff]
    %v187 = vld [vmem:[#allocation2 + $0x498] sm:$0xff]
    %v188 = vld [vmem:[#allocation2 + $0x4a0] sm:$0xff]
    %v189 = vld [vmem:[#allocation2 + $0x4a8] sm:$0xff]
    %v190 = vld [vmem:[#allocation2 + $0x4b0] sm:$0xff]
    %v191 = vld [vmem:[#allocation2 + $0x4b8] sm:$0xff]
    %v192 = vld [vmem:[#allocation2 + $0x4c0] sm:$0xff]
    %v193 = vld [vmem:[#allocation2 + $0x4c8] sm:$0xff]
    %v194 = vld [vmem:[#allocation2 + $0x4d0] sm:$0xff]
    %v195 = vld [vmem:[#allocation2 + $0x4d8] sm:$0xff]
    %v196 = vld [vmem:[#allocation2 + $0x4e0] sm:$0xff]
    %v197 = vld [vmem:[#allocation2 + $0x4e8] sm:$0xff]
    %v198 = vld [vmem:[#allocation2 + $0x4f0] sm:$0xff]
    %v199 = vld [vmem:[#allocation2 + $0x4f8] sm:$0xff]
    %v200 = vld [vmem:[#allocation2 + $0x500] sm:$0xff]
    %v201 = vld [vmem:[#allocation2 + $0x508] sm:$0xff]
    %v202 = vld [vmem:[#allocation2 + $0x510] sm:$0xff]
    %v203 = vld [vmem:[#allocation2 + $0x518] sm:$0xff]
    %v204 = vld [vmem:[#allocation2 + $0x520] sm:$0xff]
    %v205 = vld [vmem:[#allocation2 + $0x528] sm:$0xff]
    %v206 = vld [vmem:[#allocation2 + $0x530] sm:$0xff]
    %v207 = vld [vmem:[#allocation2 + $0x538] sm:$0xff]
    %v208 = vld [vmem:[#allocation2 + $0x540] sm:$0xff]
    %v209 = vld [vmem:[#allocation2 + $0x548] sm:$0xff]
    %v210 = vld [vmem:[#allocation2 + $0x550] sm:$0xff]
    %v211 = vld [vmem:[#allocation2 + $0x558] sm:$0xff]
    %v212 = vld [vmem:[#allocation2 + $0x560] sm:$0xff]
    %v213 = vld [vmem:[#allocation2 + $0x568] sm:$0xff]
    %v214 = vld [vmem:[#allocation2 + $0x570] sm:$0xff]
    %v215 = vld [vmem:[#allocation2 + $0x578] sm:$0xff]
    %v216 = vld [vmem:[#allocation2 + $0x580] sm:$0xff]
    %v217 = vld [vmem:[#allocation2 + $0x588] sm:$0xff]
    %v218 = vld [vmem:[#allocation2 + $0x590] sm:$0xff]
    %v219 = vld [vmem:[#allocation2 + $0x598] sm:$0xff]
    %v220 = vld [vmem:[#allocation2 + $0x5a0] sm:$0xff]
    %v221 = vld [vmem:[#allocation2 + $0x5a8] sm:$0xff]
    %v222 = vld [vmem:[#allocation2 + $0x5b0] sm:$0xff]
    %v223 = vld [vmem:[#allocation2 + $0x5b8] sm:$0xff]
    %v224 = vld [vmem:[#allocation2 + $0x5c0] sm:$0xff]
    %v225 = vld [vmem:[#allocation2 + $0x5c8] sm:$0xff]
    %v226 = vld [vmem:[#allocation2 + $0x5d0] sm:$0xff]
    %v227 = vld [vmem:[#allocation2 + $0x5d8] sm:$0xff]
    %v228 = vld [vmem:[#allocation2 + $0x5e0] sm:$0xff]
    %v229 = vld [vmem:[#allocation2 + $0x5e8] sm:$0xff]
    %v230 = vld [vmem:[#allocation2 + $0x5f0] sm:$0xff]
    %v231 = vld [vmem:[#allocation2 + $0x5f8] sm:$0xff]
    %v232 = vld [vmem:[#allocation2 + $0x600] sm:$0xff]
    %v233 = vld [vmem:[#allocation2 + $0x608] sm:$0xff]
    %v234 = vld [vmem:[#allocation2 + $0x610] sm:$0xff]
    %v235 = vld [vmem:[#allocation2 + $0x618] sm:$0xff]
    %v236 = vld [vmem:[#allocation2 + $0x620] sm:$0xff]
    %v237 = vld [vmem:[#allocation2 + $0x628] sm:$0xff]
    %v238 = vld [vmem:[#allocation2 + $0x630] sm:$0xff]
    %v239 = vld [vmem:[#allocation2 + $0x638] sm:$0xff]
    %v240 = vld [vmem:[#allocation2 + $0x640] sm:$0xff]
    %v241 = vld [vmem:[#allocation2 + $0x648] sm:$0xff]
    %v242 = vld [vmem:[#allocation2 + $0x650] sm:$0xff]
    %v243 = vld [vmem:[#allocation2 + $0x658] sm:$0xff]
    %v244 = vld [vmem:[#allocation2 + $0x660] sm:$0xff]
    %v245 = vld [vmem:[#allocation2 + $0x668] sm:$0xff]
    %v246 = vld [vmem:[#allocation2 + $0x670] sm:$0xff]
    %v247 = vld [vmem:[#allocation2 + $0x678] sm:$0xff]
    %v248 = vld [vmem:[#allocation2 + $0x680] sm:$0xff]
    %v249 = vld [vmem:[#allocation2 + $0x688] sm:$0xff]
    %v250 = vld [vmem:[#allocation2 + $0x690] sm:$0xff]
    %v251 = vld [vmem:[#allocation2 + $0x698] sm:$0xff]
    %v252 = vld [vmem:[#allocation2 + $0x6a0] sm:$0xff]
    %v253 = vld [vmem:[#allocation2 + $0x6a8] sm:$0xff]
    %v254 = vld [vmem:[#allocation2 + $0x6b0] sm:$0xff]
    %v255 = vld [vmem:[#allocation2 + $0x6b8] sm:$0xff]
    %v256 = vld [vmem:[#allocation2 + $0x6c0] sm:$0xff]
    %v257 = vld [vmem:[#allocation2 + $0x6c8] sm:$0xff]
    %v258 = vld [vmem:[#allocation2 + $0x6d0] sm:$0xff]
    %v259 = vld [vmem:[#allocation2 + $0x6d8] sm:$0xff]
    %v260 = vld [vmem:[#allocation2 + $0x6e0] sm:$0xff]
    %v261 = vld [vmem:[#allocation2 + $0x6e8] sm:$0xff]
    %v262 = vld [vmem:[#allocation2 + $0x6f0] sm:$0xff]
    %v263 = vld [vmem:[#allocation2 + $0x6f8] sm:$0xff]
    %v264 = vld [vmem:[#allocation2 + $0x700] sm:$0xff]
    %v265 = vld [vmem:[#allocation2 + $0x708] sm:$0xff]
    %v266 = vld [vmem:[#allocation2 + $0x710] sm:$0xff]
    %v267 = vld [vmem:[#allocation2 + $0x718] sm:$0xff]
    %v268 = vld [vmem:[#allocation2 + $0x720] sm:$0xff]
    %v269 = vld [vmem:[#allocation2 + $0x728] sm:$0xff]
    %v270 = vld [vmem:[#allocation2 + $0x730] sm:$0xff]
    %v271 = vld [vmem:[#allocation2 + $0x738] sm:$0xff]
    %v272 = vld [vmem:[#allocation2 + $0x740] sm:$0xff]
    %v273 = vld [vmem:[#allocation2 + $0x748] sm:$0xff]
    %v274 = vld [vmem:[#allocation2 + $0x750] sm:$0xff]
    %v275 = vld [vmem:[#allocation2 + $0x758] sm:$0xff]
    %v276 = vld [vmem:[#allocation2 + $0x760] sm:$0xff]
    %v277 = vld [vmem:[#allocation2 + $0x768] sm:$0xff]
    %v278 = vld [vmem:[#allocation2 + $0x770] sm:$0xff]
    %v279 = vld [vmem:[#allocation2 + $0x778] sm:$0xff]
    %v280 = vld [vmem:[#allocation2 + $0x780] sm:$0xff]
    %v281 = vld [vmem:[#allocation2 + $0x788] sm:$0xff]
    %v282 = vld [vmem:[#allocation2 + $0x790] sm:$0xff]
    %v283 = vld [vmem:[#allocation2 + $0x798] sm:$0xff]
    %v284 = vld [vmem:[#allocation2 + $0x7a0] sm:$0xff]
    %v285 = vld [vmem:[#allocation2 + $0x7a8] sm:$0xff]
    %v286 = vld [vmem:[#allocation2 + $0x7b0] sm:$0xff]
    %v287 = vld [vmem:[#allocation2 + $0x7b8] sm:$0xff]
    %v288 = vld [vmem:[#allocation2 + $0x7c0] sm:$0xff]
    %v289 = vld [vmem:[#allocation2 + $0x7c8] sm:$0xff]
    %v290 = vld [vmem:[#allocation2 + $0x7d0] sm:$0xff]
    %v291 = vld [vmem:[#allocation2 + $0x7d8] sm:$0xff]
    %v292 = vld [vmem:[#allocation2 + $0x7e0] sm:$0xff]
    %v293 = vld [vmem:[#allocation2 + $0x7e8] sm:$0xff]
    %v294 = vld [vmem:[#allocation2 + $0x7f0] sm:$0xff]
    %v295 = vld [vmem:[#allocation2 + $0x7f8] sm:$0xff]
    %v296 = vld [vmem:[#allocation2 + $0x800] sm:$0xff]
    %v297 = vld [vmem:[#allocation2 + $0x808] sm:$0x3]
    %v298 = vld [vmem:[#allocation5] sm:$0xff]
    %v299 = vld [vmem:[#allocation5 + $0x8] sm:$0xff]
    %v300 = vld [vmem:[#allocation5 + $0x10] sm:$0xff]
    %v301 = vld [vmem:[#allocation5 + $0x18] sm:$0xff]
    %v302 = vld [vmem:[#allocation5 + $0x20] sm:$0xff]
    %v303 = vld [vmem:[#allocation5 + $0x28] sm:$0xff]
    %v304 = vld [vmem:[#allocation5 + $0x30] sm:$0xff]
    %v305 = vld [vmem:[#allocation5 + $0x38] sm:$0xff]
    %v306 = vld [vmem:[#allocation5 + $0x40] sm:$0xff]
    %v307 = vld [vmem:[#allocation5 + $0x48] sm:$0xff]
    %v308 = vld [vmem:[#allocation5 + $0x50] sm:$0xff]
    %v309 = vld [vmem:[#allocation5 + $0x58] sm:$0xff]
    %v310 = vld [vmem:[#allocation5 + $0x60] sm:$0xff]
    %v311 = vld [vmem:[#allocation5 + $0x68] sm:$0xff]
    %v312 = vld [vmem:[#allocation5 + $0x70] sm:$0xff]
    %v313 = vld [vmem:[#allocation5 + $0x78] sm:$0xff]
    %v314 = vld [vmem:[#allocation5 + $0x80] sm:$0xff]
    %v315 = vld [vmem:[#allocation5 + $0x88] sm:$0xff]
    %v316 = vld [vmem:[#allocation5 + $0x90] sm:$0xff]
    %v317 = vld [vmem:[#allocation5 + $0x98] sm:$0xff]
    %v318 = vld [vmem:[#allocation5 + $0xa0] sm:$0xff]
    %v319 = vld [vmem:[#allocation5 + $0xa8] sm:$0xff]
    %v320 = vld [vmem:[#allocation5 + $0xb0] sm:$0xff]
    %v321 = vld [vmem:[#allocation5 + $0xb8] sm:$0xff]
    %v322 = vld [vmem:[#allocation5 + $0xc0] sm:$0xff]
    %v323 = vld [vmem:[#allocation5 + $0xc8] sm:$0xff]
    %v324 = vld [vmem:[#allocation5 + $0xd0] sm:$0xff]
    %v325 = vld [vmem:[#allocation5 + $0xd8] sm:$0xff]
    %v326 = vld [vmem:[#allocation5 + $0xe0] sm:$0xff]
    %v327 = vld [vmem:[#allocation5 + $0xe8] sm:$0xff]
    %v328 = vld [vmem:[#allocation5 + $0xf0] sm:$0xff]
    %v329 = vld [vmem:[#allocation5 + $0xf8] sm:$0xff]
    %v330 = vld [vmem:[#allocation5 + $0x100] sm:$0xff]
    %v331 = vld [vmem:[#allocation5 + $0x108] sm:$0xff]
    %v332 = vld [vmem:[#allocation5 + $0x110] sm:$0xff]
    %v333 = vld [vmem:[#allocation5 + $0x118] sm:$0xff]
    %v334 = vld [vmem:[#allocation5 + $0x120] sm:$0xff]
    %v335 = vld [vmem:[#allocation5 + $0x128] sm:$0xff]
    %v336 = vld [vmem:[#allocation5 + $0x130] sm:$0xff]
    %v337 = vld [vmem:[#allocation5 + $0x138] sm:$0xff]
    %v338 = vld [vmem:[#allocation5 + $0x140] sm:$0xff]
    %v339 = vld [vmem:[#allocation5 + $0x148] sm:$0xff]
    %v340 = vld [vmem:[#allocation5 + $0x150] sm:$0xff]
    %v341 = vld [vmem:[#allocation5 + $0x158] sm:$0xff]
    %v342 = vld [vmem:[#allocation5 + $0x160] sm:$0xff]
    %v343 = vld [vmem:[#allocation5 + $0x168] sm:$0xff]
    %v344 = vld [vmem:[#allocation5 + $0x170] sm:$0xff]
    %v345 = vld [vmem:[#allocation5 + $0x178] sm:$0xff]
    %v346 = vld [vmem:[#allocation5 + $0x180] sm:$0xff]
    %v347 = vld [vmem:[#allocation5 + $0x188] sm:$0xff]
    %v348 = vld [vmem:[#allocation5 + $0x190] sm:$0xff]
    %v349 = vld [vmem:[#allocation5 + $0x198] sm:$0xff]
    %v350 = vld [vmem:[#allocation5 + $0x1a0] sm:$0xff]
    %v351 = vld [vmem:[#allocation5 + $0x1a8] sm:$0xff]
    %v352 = vld [vmem:[#allocation5 + $0x1b0] sm:$0xff]
    %v353 = vld [vmem:[#allocation5 + $0x1b8] sm:$0xff]
    %v354 = vld [vmem:[#allocation5 + $0x1c0] sm:$0xff]
    %v355 = vld [vmem:[#allocation5 + $0x1c8] sm:$0xff]
    %v356 = vld [vmem:[#allocation5 + $0x1d0] sm:$0xff]
    %v357 = vld [vmem:[#allocation5 + $0x1d8] sm:$0xff]
    %v358 = vld [vmem:[#allocation5 + $0x1e0] sm:$0xff]
    %v359 = vld [vmem:[#allocation5 + $0x1e8] sm:$0xff]
    %v360 = vld [vmem:[#allocation5 + $0x1f0] sm:$0xff]
    %v361 = vld [vmem:[#allocation5 + $0x1f8] sm:$0xff]
    %v362 = vld [vmem:[#allocation5 + $0x200] sm:$0xff]
    %v363 = vld [vmem:[#allocation5 + $0x208] sm:$0xff]
    %v364 = vld [vmem:[#allocation5 + $0x210] sm:$0xff]
    %v365 = vld [vmem:[#allocation5 + $0x218] sm:$0xff]
    %v366 = vld [vmem:[#allocation5 + $0x220] sm:$0xff]
    %v367 = vld [vmem:[#allocation5 + $0x228] sm:$0xff]
    %v368 = vld [vmem:[#allocation5 + $0x230] sm:$0xff]
    %v369 = vld [vmem:[#allocation5 + $0x238] sm:$0xff]
    %v370 = vld [vmem:[#allocation5 + $0x240] sm:$0xff]
    %v371 = vld [vmem:[#allocation5 + $0x248] sm:$0xff]
    %v372 = vld [vmem:[#allocation5 + $0x250] sm:$0xff]
    %v373 = vld [vmem:[#allocation5 + $0x258] sm:$0xff]
    %v374 = vld [vmem:[#allocation5 + $0x260] sm:$0xff]
    %v375 = vld [vmem:[#allocation5 + $0x268] sm:$0xff]
    %v376 = vld [vmem:[#allocation5 + $0x270] sm:$0xff]
    %v377 = vld [vmem:[#allocation5 + $0x278] sm:$0xff]
    %v378 = vld [vmem:[#allocation5 + $0x280] sm:$0xff]
    %v379 = vld [vmem:[#allocation5 + $0x288] sm:$0xff]
    %v380 = vld [vmem:[#allocation5 + $0x290] sm:$0xff]
    %v381 = vld [vmem:[#allocation5 + $0x298] sm:$0xff]
    %v382 = vld [vmem:[#allocation5 + $0x2a0] sm:$0xff]
    %v383 = vld [vmem:[#allocation5 + $0x2a8] sm:$0xff]
    %v384 = vld [vmem:[#allocation5 + $0x2b0] sm:$0xff]
    %v385 = vld [vmem:[#allocation5 + $0x2b8] sm:$0xff]
    %v386 = vld [vmem:[#allocation5 + $0x2c0] sm:$0xff]
    %v387 = vld [vmem:[#allocation5 + $0x2c8] sm:$0xff]
    %v388 = vld [vmem:[#allocation5 + $0x2d0] sm:$0xff]
    %v389 = vld [vmem:[#allocation5 + $0x2d8] sm:$0xff]
    %v390 = vld [vmem:[#allocation5 + $0x2e0] sm:$0xff]
    %v391 = vld [vmem:[#allocation5 + $0x2e8] sm:$0xff]
    %v392 = vld [vmem:[#allocation5 + $0x2f0] sm:$0xff]
    %v393 = vld [vmem:[#allocation5 + $0x2f8] sm:$0xff]
    %v394 = vld [vmem:[#allocation5 + $0x300] sm:$0xff]
    %v395 = vld [vmem:[#allocation5 + $0x308] sm:$0xff]
    %v396 = vld [vmem:[#allocation5 + $0x310] sm:$0xff]
    %v397 = vld [vmem:[#allocation5 + $0x318] sm:$0xff]
    %v398 = vld [vmem:[#allocation5 + $0x320] sm:$0xff]
    %v399 = vld [vmem:[#allocation5 + $0x328] sm:$0xff]
    %v400 = vld [vmem:[#allocation5 + $0x330] sm:$0xff]
    %v401 = vld [vmem:[#allocation5 + $0x338] sm:$0xff]
    %v402 = vld [vmem:[#allocation5 + $0x340] sm:$0xff]
    %v403 = vld [vmem:[#allocation5 + $0x348] sm:$0xff]
    %v404 = vld [vmem:[#allocation5 + $0x350] sm:$0xff]
    %v405 = vld [vmem:[#allocation5 + $0x358] sm:$0xff]
    %v406 = vld [vmem:[#allocation5 + $0x360] sm:$0xff]
    %v407 = vld [vmem:[#allocation5 + $0x368] sm:$0xff]
    %v408 = vld [vmem:[#allocation5 + $0x370] sm:$0xff]
    %v409 = vld [vmem:[#allocation5 + $0x378] sm:$0xff]
    %v410 = vld [vmem:[#allocation5 + $0x380] sm:$0xff]
    %v411 = vld [vmem:[#allocation5 + $0x388] sm:$0xff]
    %v412 = vld [vmem:[#allocation5 + $0x390] sm:$0xff]
    %v413 = vld [vmem:[#allocation5 + $0x398] sm:$0xff]
    %v414 = vld [vmem:[#allocation5 + $0x3a0] sm:$0xff]
    %v415 = vld [vmem:[#allocation5 + $0x3a8] sm:$0xff]
    %v416 = vld [vmem:[#allocation5 + $0x3b0] sm:$0xff]
    %v417 = vld [vmem:[#allocation5 + $0x3b8] sm:$0xff]
    %v418 = vld [vmem:[#allocation5 + $0x3c0] sm:$0xff]
    %v419 = vld [vmem:[#allocation5 + $0x3c8] sm:$0xff]
    %v420 = vld [vmem:[#allocation5 + $0x3d0] sm:$0xff]
    %v421 = vld [vmem:[#allocation5 + $0x3d8] sm:$0xff]
    %v422 = vld [vmem:[#allocation5 + $0x3e0] sm:$0xff]
    %v423 = vld [vmem:[#allocation5 + $0x3e8] sm:$0xff]
    %v424 = vld [vmem:[#allocation5 + $0x3f0] sm:$0xff]
    %v425 = vld [vmem:[#allocation5 + $0x3f8] sm:$0xff]
    %v426 = vld [vmem:[#allocation5 + $0x400] sm:$0xff]
    %v427 = vld [vmem:[#allocation5 + $0x408] sm:$0xff]
    %v428 = vld [vmem:[#allocation5 + $0x410] sm:$0xff]
    %v429 = vld [vmem:[#allocation5 + $0x418] sm:$0xff]
    %v430 = vld [vmem:[#allocation5 + $0x420] sm:$0xff]
    %v431 = vld [vmem:[#allocation5 + $0x428] sm:$0xff]
    %v432 = vld [vmem:[#allocation5 + $0x430] sm:$0xff]
    %v433 = vld [vmem:[#allocation5 + $0x438] sm:$0xff]
    %v434 = vld [vmem:[#allocation5 + $0x440] sm:$0xff]
    %v435 = vld [vmem:[#allocation5 + $0x448] sm:$0xff]
    %v436 = vld [vmem:[#allocation5 + $0x450] sm:$0xff]
    %v437 = vld [vmem:[#allocation5 + $0x458] sm:$0xff]
    %v438 = vld [vmem:[#allocation5 + $0x460] sm:$0xff]
    %v439 = vld [vmem:[#allocation5 + $0x468] sm:$0xff]
    %v440 = vld [vmem:[#allocation5 + $0x470] sm:$0xff]
    %v441 = vld [vmem:[#allocation5 + $0x478] sm:$0xff]
    %v442 = vld [vmem:[#allocation5 + $0x480] sm:$0xff]
    %v443 = vld [vmem:[#allocation5 + $0x488] sm:$0xff]
    %v444 = vld [vmem:[#allocation5 + $0x490] sm:$0xff]
    %v445 = vld [vmem:[#allocation5 + $0x498] sm:$0xff]
    %v446 = vld [vmem:[#allocation5 + $0x4a0] sm:$0xff]
    %v447 = vld [vmem:[#allocation5 + $0x4a8] sm:$0xff]
    %v448 = vld [vmem:[#allocation5 + $0x4b0] sm:$0xff]
    %v449 = vld [vmem:[#allocation5 + $0x4b8] sm:$0xff]
    %v450 = vld [vmem:[#allocation5 + $0x4c0] sm:$0xff]
    %v451 = vld [vmem:[#allocation5 + $0x4c8] sm:$0xff]
    %v452 = vld [vmem:[#allocation5 + $0x4d0] sm:$0xff]
    %v453 = vld [vmem:[#allocation5 + $0x4d8] sm:$0xff]
    %v454 = vld [vmem:[#allocation5 + $0x4e0] sm:$0xff]
    %v455 = vld [vmem:[#allocation5 + $0x4e8] sm:$0xff]
    %v456 = vld [vmem:[#allocation5 + $0x4f0] sm:$0xff]
    %v457 = vld [vmem:[#allocation5 + $0x4f8] sm:$0xff]
    %v458 = vld [vmem:[#allocation5 + $0x500] sm:$0xff]
    %v459 = vld [vmem:[#allocation5 + $0x508] sm:$0xff]
    %v460 = vld [vmem:[#allocation5 + $0x510] sm:$0xff]
    %v461 = vld [vmem:[#allocation5 + $0x518] sm:$0xff]
    %v462 = vld [vmem:[#allocation5 + $0x520] sm:$0xff]
    %v463 = vld [vmem:[#allocation5 + $0x528] sm:$0xff]
    %v464 = vld [vmem:[#allocation5 + $0x530] sm:$0xff]
    %v465 = vld [vmem:[#allocation5 + $0x538] sm:$0xff]
    %v466 = vld [vmem:[#allocation5 + $0x540] sm:$0xff]
    %v467 = vld [vmem:[#allocation5 + $0x548] sm:$0xff]
    %v468 = vld [vmem:[#allocation5 + $0x550] sm:$0xff]
    %v469 = vld [vmem:[#allocation5 + $0x558] sm:$0xff]
    %v470 = vld [vmem:[#allocation5 + $0x560] sm:$0xff]
    %v471 = vld [vmem:[#allocation5 + $0x568] sm:$0xff]
    %v472 = vld [vmem:[#allocation5 + $0x570] sm:$0xff]
    %v473 = vld [vmem:[#allocation5 + $0x578] sm:$0xff]
    %v474 = vld [vmem:[#allocation5 + $0x580] sm:$0xff]
    %v475 = vld [vmem:[#allocation5 + $0x588] sm:$0xff]
    %v476 = vld [vmem:[#allocation5 + $0x590] sm:$0xff]
    %v477 = vld [vmem:[#allocation5 + $0x598] sm:$0xff]
    %v478 = vld [vmem:[#allocation5 + $0x5a0] sm:$0xff]
    %v479 = vld [vmem:[#allocation5 + $0x5a8] sm:$0xff]
    %v480 = vld [vmem:[#allocation5 + $0x5b0] sm:$0xff]
    %v481 = vld [vmem:[#allocation5 + $0x5b8] sm:$0xff]
    %v482 = vld [vmem:[#allocation5 + $0x5c0] sm:$0xff]
    %v483 = vld [vmem:[#allocation5 + $0x5c8] sm:$0xff]
    %v484 = vld [vmem:[#allocation5 + $0x5d0] sm:$0xff]
    %v485 = vld [vmem:[#allocation5 + $0x5d8] sm:$0xff]
    %v486 = vld [vmem:[#allocation5 + $0x5e0] sm:$0xff]
    %v487 = vld [vmem:[#allocation5 + $0x5e8] sm:$0xff]
    %v488 = vld [vmem:[#allocation5 + $0x5f0] sm:$0xff]
    %v489 = vld [vmem:[#allocation5 + $0x5f8] sm:$0xff]
    %v490 = vld [vmem:[#allocation5 + $0x600] sm:$0xff]
    %v491 = vld [vmem:[#allocation5 + $0x608] sm:$0xff]
    %v492 = vld [vmem:[#allocation5 + $0x610] sm:$0xff]
    %v493 = vld [vmem:[#allocation5 + $0x618] sm:$0xff]
    %v494 = vld [vmem:[#allocation5 + $0x620] sm:$0xff]
    %v495 = vld [vmem:[#allocation5 + $0x628] sm:$0xff]
    %v496 = vld [vmem:[#allocation5 + $0x630] sm:$0xff]
    %v497 = vld [vmem:[#allocation5 + $0x638] sm:$0xff]
    %v498 = vld [vmem:[#allocation5 + $0x640] sm:$0xff]
    %v499 = vld [vmem:[#allocation5 + $0x648] sm:$0xff]
    %v500 = vld [vmem:[#allocation5 + $0x650] sm:$0xff]
    %v501 = vld [vmem:[#allocation5 + $0x658] sm:$0xff]
    %v502 = vld [vmem:[#allocation5 + $0x660] sm:$0xff]
    %v503 = vld [vmem:[#allocation5 + $0x668] sm:$0xff]
    %v504 = vld [vmem:[#allocation5 + $0x670] sm:$0xff]
    %v505 = vld [vmem:[#allocation5 + $0x678] sm:$0xff]
    %v506 = vld [vmem:[#allocation5 + $0x680] sm:$0xff]
    %v507 = vld [vmem:[#allocation5 + $0x688] sm:$0xff]
    %v508 = vld [vmem:[#allocation5 + $0x690] sm:$0xff]
    %v509 = vld [vmem:[#allocation5 + $0x698] sm:$0xff]
    %v510 = vld [vmem:[#allocation5 + $0x6a0] sm:$0xff]
    %v511 = vld [vmem:[#allocation5 + $0x6a8] sm:$0xff]
    %v512 = vld [vmem:[#allocation5 + $0x6b0] sm:$0xff]
    %v513 = vld [vmem:[#allocation5 + $0x6b8] sm:$0xff]
    %v514 = vld [vmem:[#allocation5 + $0x6c0] sm:$0xff]
    %v515 = vld [vmem:[#allocation5 + $0x6c8] sm:$0xff]
    %v516 = vld [vmem:[#allocation5 + $0x6d0] sm:$0xff]
    %v517 = vld [vmem:[#allocation5 + $0x6d8] sm:$0xff]
    %v518 = vld [vmem:[#allocation5 + $0x6e0] sm:$0xff]
    %v519 = vld [vmem:[#allocation5 + $0x6e8] sm:$0xff]
    %v520 = vld [vmem:[#allocation5 + $0x6f0] sm:$0xff]
    %v521 = vld [vmem:[#allocation5 + $0x6f8] sm:$0xff]
    %v522 = vld [vmem:[#allocation5 + $0x700] sm:$0xff]
    %v523 = vld [vmem:[#allocation5 + $0x708] sm:$0xff]
    %v524 = vld [vmem:[#allocation5 + $0x710] sm:$0xff]
    %v525 = vld [vmem:[#allocation5 + $0x718] sm:$0xff]
    %v526 = vld [vmem:[#allocation5 + $0x720] sm:$0xff]
    %v527 = vld [vmem:[#allocation5 + $0x728] sm:$0xff]
    %v528 = vld [vmem:[#allocation5 + $0x730] sm:$0xff]
    %v529 = vld [vmem:[#allocation5 + $0x738] sm:$0xff]
    %v530 = vld [vmem:[#allocation5 + $0x740] sm:$0xff]
    %v531 = vld [vmem:[#allocation5 + $0x748] sm:$0xff]
    %v532 = vld [vmem:[#allocation5 + $0x750] sm:$0xff]
    %v533 = vld [vmem:[#allocation5 + $0x758] sm:$0xff]
    %v534 = vld [vmem:[#allocation5 + $0x760] sm:$0xff]
    %v535 = vld [vmem:[#allocation5 + $0x768] sm:$0xff]
    %v536 = vld [vmem:[#allocation5 + $0x770] sm:$0xff]
    %v537 = vld [vmem:[#allocation5 + $0x778] sm:$0xff]
    %v538 = vld [vmem:[#allocation5 + $0x780] sm:$0xff]
    %v539 = vld [vmem:[#allocation5 + $0x788] sm:$0xff]
    %v540 = vld [vmem:[#allocation5 + $0x790] sm:$0xff]
    %v541 = vld [vmem:[#allocation5 + $0x798] sm:$0xff]
    %v542 = vld [vmem:[#allocation5 + $0x7a0] sm:$0xff]
    %v543 = vld [vmem:[#allocation5 + $0x7a8] sm:$0xff]
    %v544 = vld [vmem:[#allocation5 + $0x7b0] sm:$0xff]
    %v545 = vld [vmem:[#allocation5 + $0x7b8] sm:$0xff]
    %v546 = vld [vmem:[#allocation5 + $0x7c0] sm:$0xff]
    %v547 = vld [vmem:[#allocation5 + $0x7c8] sm:$0xff]
    %v548 = vld [vmem:[#allocation5 + $0x7d0] sm:$0xff]
    %v549 = vld [vmem:[#allocation5 + $0x7d8] sm:$0xff]
    %v550 = vld [vmem:[#allocation5 + $0x7e0] sm:$0xff]
    %v551 = vld [vmem:[#allocation5 + $0x7e8] sm:$0xff]
    %v552 = vld [vmem:[#allocation5 + $0x7f0] sm:$0xff]
    %v553 = vld [vmem:[#allocation5 + $0x7f8] sm:$0xff]
    %v554 = vld [vmem:[#allocation5 + $0x800] sm:$0xff]
    %v555 = vld [vmem:[#allocation5 + $0x808] sm:$0x3]
    %v556 = vadd.f32 %v40, %v298
    %v557 = vadd.f32 %v41, %v299
    %v558 = vadd.f32 %v42, %v300
    %v559 = vadd.f32 %v43, %v301
    %v560 = vadd.f32 %v44, %v302
    %v561 = vadd.f32 %v45, %v303
    %v562 = vadd.f32 %v46, %v304
    %v563 = vadd.f32 %v47, %v305
    %v564 = vadd.f32 %v48, %v306
    %v565 = vadd.f32 %v49, %v307
    %v566 = vadd.f32 %v50, %v308
    %v567 = vadd.f32 %v51, %v309
    %v568 = vadd.f32 %v52, %v310
    %v569 = vadd.f32 %v53, %v311
    %v570 = vadd.f32 %v54, %v312
    %v571 = vadd.f32 %v55, %v313
    %v572 = vadd.f32 %v56, %v314
    %v573 = vadd.f32 %v57, %v315
    %v574 = vadd.f32 %v58, %v316
    %v575 = vadd.f32 %v59, %v317
    %v576 = vadd.f32 %v60, %v318
    %v577 = vadd.f32 %v61, %v319
    %v578 = vadd.f32 %v62, %v320
    %v579 = vadd.f32 %v63, %v321
    %v580 = vadd.f32 %v64, %v322
    %v581 = vadd.f32 %v65, %v323
    %v582 = vadd.f32 %v66, %v324
    %v583 = vadd.f32 %v67, %v325
    %v584 = vadd.f32 %v68, %v326
    %v585 = vadd.f32 %v69, %v327
    %v586 = vadd.f32 %v70, %v328
    %v587 = vadd.f32 %v71, %v329
    %v588 = vadd.f32 %v72, %v330
    %v589 = vadd.f32 %v73, %v331
    %v590 = vadd.f32 %v74, %v332
    %v591 = vadd.f32 %v75, %v333
    %v592 = vadd.f32 %v76, %v334
    %v593 = vadd.f32 %v77, %v335
    %v594 = vadd.f32 %v78, %v336
    %v595 = vadd.f32 %v79, %v337
    %v596 = vadd.f32 %v80, %v338
    %v597 = vadd.f32 %v81, %v339
    %v598 = vadd.f32 %v82, %v340
    %v599 = vadd.f32 %v83, %v341
    %v600 = vadd.f32 %v84, %v342
    %v601 = vadd.f32 %v85, %v343
    %v602 = vadd.f32 %v86, %v344
    %v603 = vadd.f32 %v87, %v345
    %v604 = vadd.f32 %v88, %v346
    %v605 = vadd.f32 %v89, %v347
    %v606 = vadd.f32 %v90, %v348
    %v607 = vadd.f32 %v91, %v349
    %v608 = vadd.f32 %v92, %v350
    %v609 = vadd.f32 %v93, %v351
    %v610 = vadd.f32 %v94, %v352
    %v611 = vadd.f32 %v95, %v353
    %v612 = vadd.f32 %v96, %v354
    %v613 = vadd.f32 %v97, %v355
    %v614 = vadd.f32 %v98, %v356
    %v615 = vadd.f32 %v99, %v357
    %v616 = vadd.f32 %v100, %v358
    %v617 = vadd.f32 %v101, %v359
    %v618 = vadd.f32 %v102, %v360
    %v619 = vadd.f32 %v103, %v361
    %v620 = vadd.f32 %v104, %v362
    %v621 = vadd.f32 %v105, %v363
    %v622 = vadd.f32 %v106, %v364
    %v623 = vadd.f32 %v107, %v365
    %v624 = vadd.f32 %v108, %v366
    %v625 = vadd.f32 %v109, %v367
    %v626 = vadd.f32 %v110, %v368
    %v627 = vadd.f32 %v111, %v369
    %v628 = vadd.f32 %v112, %v370
    %v629 = vadd.f32 %v113, %v371
    %v630 = vadd.f32 %v114, %v372
    %v631 = vadd.f32 %v115, %v373
    %v632 = vadd.f32 %v116, %v374
    %v633 = vadd.f32 %v117, %v375
    %v634 = vadd.f32 %v118, %v376
    %v635 = vadd.f32 %v119, %v377
    %v636 = vadd.f32 %v120, %v378
    %v637 = vadd.f32 %v121, %v379
    %v638 = vadd.f32 %v122, %v380
    %v639 = vadd.f32 %v123, %v381
    %v640 = vadd.f32 %v124, %v382
    %v641 = vadd.f32 %v125, %v383
    %v642 = vadd.f32 %v126, %v384
    %v643 = vadd.f32 %v127, %v385
    %v644 = vadd.f32 %v128, %v386
    %v645 = vadd.f32 %v129, %v387
    %v646 = vadd.f32 %v130, %v388
    %v647 = vadd.f32 %v131, %v389
    %v648 = vadd.f32 %v132, %v390
    %v649 = vadd.f32 %v133, %v391
    %v650 = vadd.f32 %v134, %v392
    %v651 = vadd.f32 %v135, %v393
    %v652 = vadd.f32 %v136, %v394
    %v653 = vadd.f32 %v137, %v395
    %v654 = vadd.f32 %v138, %v396
    %v655 = vadd.f32 %v139, %v397
    %v656 = vadd.f32 %v140, %v398
    %v657 = vadd.f32 %v141, %v399
    %v658 = vadd.f32 %v142, %v400
    %v659 = vadd.f32 %v143, %v401
    %v660 = vadd.f32 %v144, %v402
    %v661 = vadd.f32 %v145, %v403
    %v662 = vadd.f32 %v146, %v404
    %v663 = vadd.f32 %v147, %v405
    %v664 = vadd.f32 %v148, %v406
    %v665 = vadd.f32 %v149, %v407
    %v666 = vadd.f32 %v150, %v408
    %v667 = vadd.f32 %v151, %v409
    %v668 = vadd.f32 %v152, %v410
    %v669 = vadd.f32 %v153, %v411
    %v670 = vadd.f32 %v154, %v412
    %v671 = vadd.f32 %v155, %v413
    %v672 = vadd.f32 %v156, %v414
    %v673 = vadd.f32 %v157, %v415
    %v674 = vadd.f32 %v158, %v416
    %v675 = vadd.f32 %v159, %v417
    %v676 = vadd.f32 %v160, %v418
    %v677 = vadd.f32 %v161, %v419
    %v678 = vadd.f32 %v162, %v420
    %v679 = vadd.f32 %v163, %v421
    %v680 = vadd.f32 %v164, %v422
    %v681 = vadd.f32 %v165, %v423
    %v682 = vadd.f32 %v166, %v424
    %v683 = vadd.f32 %v167, %v425
    %v684 = vadd.f32 %v168, %v426
    %v685 = vadd.f32 %v169, %v427
    %v686 = vadd.f32 %v170, %v428
    %v687 = vadd.f32 %v171, %v429
    %v688 = vadd.f32 %v172, %v430
    %v689 = vadd.f32 %v173, %v431
    %v690 = vadd.f32 %v174, %v432
    %v691 = vadd.f32 %v175, %v433
    %v692 = vadd.f32 %v176, %v434
    %v693 = vadd.f32 %v177, %v435
    %v694 = vadd.f32 %v178, %v436
    %v695 = vadd.f32 %v179, %v437
    %v696 = vadd.f32 %v180, %v438
    %v697 = vadd.f32 %v181, %v439
    %v698 = vadd.f32 %v182, %v440
    %v699 = vadd.f32 %v183, %v441
    %v700 = vadd.f32 %v184, %v442
    %v701 = vadd.f32 %v185, %v443
    %v702 = vadd.f32 %v186, %v444
    %v703 = vadd.f32 %v187, %v445
    %v704 = vadd.f32 %v188, %v446
    %v705 = vadd.f32 %v189, %v447
    %v706 = vadd.f32 %v190, %v448
    %v707 = vadd.f32 %v191, %v449
    %v708 = vadd.f32 %v192, %v450
    %v709 = vadd.f32 %v193, %v451
    %v710 = vadd.f32 %v194, %v452
    %v711 = vadd.f32 %v195, %v453
    %v712 = vadd.f32 %v196, %v454
    %v713 = vadd.f32 %v197, %v455
    %v714 = vadd.f32 %v198, %v456
    %v715 = vadd.f32 %v199, %v457
    %v716 = vadd.f32 %v200, %v458
    %v717 = vadd.f32 %v201, %v459
    %v718 = vadd.f32 %v202, %v460
    %v719 = vadd.f32 %v203, %v461
    %v720 = vadd.f32 %v204, %v462
    %v721 = vadd.f32 %v205, %v463
    %v722 = vadd.f32 %v206, %v464
    %v723 = vadd.f32 %v207, %v465
    %v724 = vadd.f32 %v208, %v466
    %v725 = vadd.f32 %v209, %v467
    %v726 = vadd.f32 %v210, %v468
    %v727 = vadd.f32 %v211, %v469
    %v728 = vadd.f32 %v212, %v470
    %v729 = vadd.f32 %v213, %v471
    %v730 = vadd.f32 %v214, %v472
    %v731 = vadd.f32 %v215, %v473
    %v732 = vadd.f32 %v216, %v474
    %v733 = vadd.f32 %v217, %v475
    %v734 = vadd.f32 %v218, %v476
    %v735 = vadd.f32 %v219, %v477
    %v736 = vadd.f32 %v220, %v478
    %v737 = vadd.f32 %v221, %v479
    %v738 = vadd.f32 %v222, %v480
    %v739 = vadd.f32 %v223, %v481
    %v740 = vadd.f32 %v224, %v482
    %v741 = vadd.f32 %v225, %v483
    %v742 = vadd.f32 %v226, %v484
    %v743 = vadd.f32 %v227, %v485
    %v744 = vadd.f32 %v228, %v486
    %v745 = vadd.f32 %v229, %v487
    %v746 = vadd.f32 %v230, %v488
    %v747 = vadd.f32 %v231, %v489
    %v748 = vadd.f32 %v232, %v490
    %v749 = vadd.f32 %v233, %v491
    %v750 = vadd.f32 %v234, %v492
    %v751 = vadd.f32 %v235, %v493
    %v752 = vadd.f32 %v236, %v494
    %v753 = vadd.f32 %v237, %v495
    %v754 = vadd.f32 %v238, %v496
    %v755 = vadd.f32 %v239, %v497
    %v756 = vadd.f32 %v240, %v498
    %v757 = vadd.f32 %v241, %v499
    %v758 = vadd.f32 %v242, %v500
    %v759 = vadd.f32 %v243, %v501
    %v760 = vadd.f32 %v244, %v502
    %v761 = vadd.f32 %v245, %v503
    %v762 = vadd.f32 %v246, %v504
    %v763 = vadd.f32 %v247, %v505
    %v764 = vadd.f32 %v248, %v506
    %v765 = vadd.f32 %v249, %v507
    %v766 = vadd.f32 %v250, %v508
    %v767 = vadd.f32 %v251, %v509
    %v768 = vadd.f32 %v252, %v510
    %v769 = vadd.f32 %v253, %v511
    %v770 = vadd.f32 %v254, %v512
    %v771 = vadd.f32 %v255, %v513
    %v772 = vadd.f32 %v256, %v514
    %v773 = vadd.f32 %v257, %v515
    %v774 = vadd.f32 %v258, %v516
    %v775 = vadd.f32 %v259, %v517
    %v776 = vadd.f32 %v260, %v518
    %v777 = vadd.f32 %v261, %v519
    %v778 = vadd.f32 %v262, %v520
    %v779 = vadd.f32 %v263, %v521
    %v780 = vadd.f32 %v264, %v522
    %v781 = vadd.f32 %v265, %v523
    %v782 = vadd.f32 %v266, %v524
    %v783 = vadd.f32 %v267, %v525
    %v784 = vadd.f32 %v268, %v526
    %v785 = vadd.f32 %v269, %v527
    %v786 = vadd.f32 %v270, %v528
    %v787 = vadd.f32 %v271, %v529
    %v788 = vadd.f32 %v272, %v530
    %v789 = vadd.f32 %v273, %v531
    %v790 = vadd.f32 %v274, %v532
    %v791 = vadd.f32 %v275, %v533
    %v792 = vadd.f32 %v276, %v534
    %v793 = vadd.f32 %v277, %v535
    %v794 = vadd.f32 %v278, %v536
    %v795 = vadd.f32 %v279, %v537
    %v796 = vadd.f32 %v280, %v538
    %v797 = vadd.f32 %v281, %v539
    %v798 = vadd.f32 %v282, %v540
    %v799 = vadd.f32 %v283, %v541
    %v800 = vadd.f32 %v284, %v542
    %v801 = vadd.f32 %v285, %v543
    %v802 = vadd.f32 %v286, %v544
    %v803 = vadd.f32 %v287, %v545
    %v804 = vadd.f32 %v288, %v546
    %v805 = vadd.f32 %v289, %v547
    %v806 = vadd.f32 %v290, %v548
    %v807 = vadd.f32 %v291, %v549
    %v808 = vadd.f32 %v292, %v550
    %v809 = vadd.f32 %v293, %v551
    %v810 = vadd.f32 %v294, %v552
    %v811 = vadd.f32 %v295, %v553
    %v812 = vadd.f32 %v296, %v554
    %v813 = vadd.f32 %v297, %v555
    %814 = vst [vmem:[#allocation7] sm:$0xff] %v556
    %815 = vst [vmem:[#allocation7 + $0x8] sm:$0xff] %v557
    %816 = vst [vmem:[#allocation7 + $0x10] sm:$0xff] %v558
    %817 = vst [vmem:[#allocation7 + $0x18] sm:$0xff] %v559
    %818 = vst [vmem:[#allocation7 + $0x20] sm:$0xff] %v560
    %819 = vst [vmem:[#allocation7 + $0x28] sm:$0xff] %v561
    %820 = vst [vmem:[#allocation7 + $0x30] sm:$0xff] %v562
    %821 = vst [vmem:[#allocation7 + $0x38] sm:$0xff] %v563
    %822 = vst [vmem:[#allocation7 + $0x40] sm:$0xff] %v564
    %823 = vst [vmem:[#allocation7 + $0x48] sm:$0xff] %v565
    %824 = vst [vmem:[#allocation7 + $0x50] sm:$0xff] %v566
    %825 = vst [vmem:[#allocation7 + $0x58] sm:$0xff] %v567
    %826 = vst [vmem:[#allocation7 + $0x60] sm:$0xff] %v568
    %827 = vst [vmem:[#allocation7 + $0x68] sm:$0xff] %v569
    %828 = vst [vmem:[#allocation7 + $0x70] sm:$0xff] %v570
    %829 = vst [vmem:[#allocation7 + $0x78] sm:$0xff] %v571
    %830 = vst [vmem:[#allocation7 + $0x80] sm:$0xff] %v572
    %831 = vst [vmem:[#allocation7 + $0x88] sm:$0xff] %v573
    %832 = vst [vmem:[#allocation7 + $0x90] sm:$0xff] %v574
    %833 = vst [vmem:[#allocation7 + $0x98] sm:$0xff] %v575
    %834 = vst [vmem:[#allocation7 + $0xa0] sm:$0xff] %v576
    %835 = vst [vmem:[#allocation7 + $0xa8] sm:$0xff] %v577
    %836 = vst [vmem:[#allocation7 + $0xb0] sm:$0xff] %v578
    %837 = vst [vmem:[#allocation7 + $0xb8] sm:$0xff] %v579
    %838 = vst [vmem:[#allocation7 + $0xc0] sm:$0xff] %v580
    %839 = vst [vmem:[#allocation7 + $0xc8] sm:$0xff] %v581
    %840 = vst [vmem:[#allocation7 + $0xd0] sm:$0xff] %v582
    %841 = vst [vmem:[#allocation7 + $0xd8] sm:$0xff] %v583
    %842 = vst [vmem:[#allocation7 + $0xe0] sm:$0xff] %v584
    %843 = vst [vmem:[#allocation7 + $0xe8] sm:$0xff] %v585
    %844 = vst [vmem:[#allocation7 + $0xf0] sm:$0xff] %v586
    %845 = vst [vmem:[#allocation7 + $0xf8] sm:$0xff] %v587
    %846 = vst [vmem:[#allocation7 + $0x100] sm:$0xff] %v588
    %847 = vst [vmem:[#allocation7 + $0x108] sm:$0xff] %v589
    %848 = vst [vmem:[#allocation7 + $0x110] sm:$0xff] %v590
    %849 = vst [vmem:[#allocation7 + $0x118] sm:$0xff] %v591
    %850 = vst [vmem:[#allocation7 + $0x120] sm:$0xff] %v592
    %851 = vst [vmem:[#allocation7 + $0x128] sm:$0xff] %v593
    %852 = vst [vmem:[#allocation7 + $0x130] sm:$0xff] %v594
    %853 = vst [vmem:[#allocation7 + $0x138] sm:$0xff] %v595
    %854 = vst [vmem:[#allocation7 + $0x140] sm:$0xff] %v596
    %855 = vst [vmem:[#allocation7 + $0x148] sm:$0xff] %v597
    %856 = vst [vmem:[#allocation7 + $0x150] sm:$0xff] %v598
    %857 = vst [vmem:[#allocation7 + $0x158] sm:$0xff] %v599
    %858 = vst [vmem:[#allocation7 + $0x160] sm:$0xff] %v600
    %859 = vst [vmem:[#allocation7 + $0x168] sm:$0xff] %v601
    %860 = vst [vmem:[#allocation7 + $0x170] sm:$0xff] %v602
    %861 = vst [vmem:[#allocation7 + $0x178] sm:$0xff] %v603
    %862 = vst [vmem:[#allocation7 + $0x180] sm:$0xff] %v604
    %863 = vst [vmem:[#allocation7 + $0x188] sm:$0xff] %v605
    %864 = vst [vmem:[#allocation7 + $0x190] sm:$0xff] %v606
    %865 = vst [vmem:[#allocation7 + $0x198] sm:$0xff] %v607
    %866 = vst [vmem:[#allocation7 + $0x1a0] sm:$0xff] %v608
    %867 = vst [vmem:[#allocation7 + $0x1a8] sm:$0xff] %v609
    %868 = vst [vmem:[#allocation7 + $0x1b0] sm:$0xff] %v610
    %869 = vst [vmem:[#allocation7 + $0x1b8] sm:$0xff] %v611
    %870 = vst [vmem:[#allocation7 + $0x1c0] sm:$0xff] %v612
    %871 = vst [vmem:[#allocation7 + $0x1c8] sm:$0xff] %v613
    %872 = vst [vmem:[#allocation7 + $0x1d0] sm:$0xff] %v614
    %873 = vst [vmem:[#allocation7 + $0x1d8] sm:$0xff] %v615
    %874 = vst [vmem:[#allocation7 + $0x1e0] sm:$0xff] %v616
    %875 = vst [vmem:[#allocation7 + $0x1e8] sm:$0xff] %v617
    %876 = vst [vmem:[#allocation7 + $0x1f0] sm:$0xff] %v618
    %877 = vst [vmem:[#allocation7 + $0x1f8] sm:$0xff] %v619
    %878 = vst [vmem:[#allocation7 + $0x200] sm:$0xff] %v620
    %879 = vst [vmem:[#allocation7 + $0x208] sm:$0xff] %v621
    %880 = vst [vmem:[#allocation7 + $0x210] sm:$0xff] %v622
    %881 = vst [vmem:[#allocation7 + $0x218] sm:$0xff] %v623
    %882 = vst [vmem:[#allocation7 + $0x220] sm:$0xff] %v624
    %883 = vst [vmem:[#allocation7 + $0x228] sm:$0xff] %v625
    %884 = vst [vmem:[#allocation7 + $0x230] sm:$0xff] %v626
    %885 = vst [vmem:[#allocation7 + $0x238] sm:$0xff] %v627
    %886 = vst [vmem:[#allocation7 + $0x240] sm:$0xff] %v628
    %887 = vst [vmem:[#allocation7 + $0x248] sm:$0xff] %v629
    %888 = vst [vmem:[#allocation7 + $0x250] sm:$0xff] %v630
    %889 = vst [vmem:[#allocation7 + $0x258] sm:$0xff] %v631
    %890 = vst [vmem:[#allocation7 + $0x260] sm:$0xff] %v632
    %891 = vst [vmem:[#allocation7 + $0x268] sm:$0xff] %v633
    %892 = vst [vmem:[#allocation7 + $0x270] sm:$0xff] %v634
    %893 = vst [vmem:[#allocation7 + $0x278] sm:$0xff] %v635
    %894 = vst [vmem:[#allocation7 + $0x280] sm:$0xff] %v636
    %895 = vst [vmem:[#allocation7 + $0x288] sm:$0xff] %v637
    %896 = vst [vmem:[#allocation7 + $0x290] sm:$0xff] %v638
    %897 = vst [vmem:[#allocation7 + $0x298] sm:$0xff] %v639
    %898 = vst [vmem:[#allocation7 + $0x2a0] sm:$0xff] %v640
    %899 = vst [vmem:[#allocation7 + $0x2a8] sm:$0xff] %v641
    %900 = vst [vmem:[#allocation7 + $0x2b0] sm:$0xff] %v642
    %901 = vst [vmem:[#allocation7 + $0x2b8] sm:$0xff] %v643
    %902 = vst [vmem:[#allocation7 + $0x2c0] sm:$0xff] %v644
    %903 = vst [vmem:[#allocation7 + $0x2c8] sm:$0xff] %v645
    %904 = vst [vmem:[#allocation7 + $0x2d0] sm:$0xff] %v646
    %905 = vst [vmem:[#allocation7 + $0x2d8] sm:$0xff] %v647
    %906 = vst [vmem:[#allocation7 + $0x2e0] sm:$0xff] %v648
    %907 = vst [vmem:[#allocation7 + $0x2e8] sm:$0xff] %v649
    %908 = vst [vmem:[#allocation7 + $0x2f0] sm:$0xff] %v650
    %909 = vst [vmem:[#allocation7 + $0x2f8] sm:$0xff] %v651
    %910 = vst [vmem:[#allocation7 + $0x300] sm:$0xff] %v652
    %911 = vst [vmem:[#allocation7 + $0x308] sm:$0xff] %v653
    %912 = vst [vmem:[#allocation7 + $0x310] sm:$0xff] %v654
    %913 = vst [vmem:[#allocation7 + $0x318] sm:$0xff] %v655
    %914 = vst [vmem:[#allocation7 + $0x320] sm:$0xff] %v656
    %915 = vst [vmem:[#allocation7 + $0x328] sm:$0xff] %v657
    %916 = vst [vmem:[#allocation7 + $0x330] sm:$0xff] %v658
    %917 = vst [vmem:[#allocation7 + $0x338] sm:$0xff] %v659
    %918 = vst [vmem:[#allocation7 + $0x340] sm:$0xff] %v660
    %919 = vst [vmem:[#allocation7 + $0x348] sm:$0xff] %v661
    %920 = vst [vmem:[#allocation7 + $0x350] sm:$0xff] %v662
    %921 = vst [vmem:[#allocation7 + $0x358] sm:$0xff] %v663
    %922 = vst [vmem:[#allocation7 + $0x360] sm:$0xff] %v664
    %923 = vst [vmem:[#allocation7 + $0x368] sm:$0xff] %v665
    %924 = vst [vmem:[#allocation7 + $0x370] sm:$0xff] %v666
    %925 = vst [vmem:[#allocation7 + $0x378] sm:$0xff] %v667
    %926 = vst [vmem:[#allocation7 + $0x380] sm:$0xff] %v668
    %927 = vst [vmem:[#allocation7 + $0x388] sm:$0xff] %v669
    %928 = vst [vmem:[#allocation7 + $0x390] sm:$0xff] %v670
    %929 = vst [vmem:[#allocation7 + $0x398] sm:$0xff] %v671
    %930 = vst [vmem:[#allocation7 + $0x3a0] sm:$0xff] %v672
    %931 = vst [vmem:[#allocation7 + $0x3a8] sm:$0xff] %v673
    %932 = vst [vmem:[#allocation7 + $0x3b0] sm:$0xff] %v674
    %933 = vst [vmem:[#allocation7 + $0x3b8] sm:$0xff] %v675
    %934 = vst [vmem:[#allocation7 + $0x3c0] sm:$0xff] %v676
    %935 = vst [vmem:[#allocation7 + $0x3c8] sm:$0xff] %v677
    %936 = vst [vmem:[#allocation7 + $0x3d0] sm:$0xff] %v678
    %937 = vst [vmem:[#allocation7 + $0x3d8] sm:$0xff] %v679
    %938 = vst [vmem:[#allocation7 + $0x3e0] sm:$0xff] %v680
    %939 = vst [vmem:[#allocation7 + $0x3e8] sm:$0xff] %v681
    %940 = vst [vmem:[#allocation7 + $0x3f0] sm:$0xff] %v682
    %941 = vst [vmem:[#allocation7 + $0x3f8] sm:$0xff] %v683
    %942 = vst [vmem:[#allocation7 + $0x400] sm:$0xff] %v684
    %943 = vst [vmem:[#allocation7 + $0x408] sm:$0xff] %v685
    %944 = vst [vmem:[#allocation7 + $0x410] sm:$0xff] %v686
    %945 = vst [vmem:[#allocation7 + $0x418] sm:$0xff] %v687
    %946 = vst [vmem:[#allocation7 + $0x420] sm:$0xff] %v688
    %947 = vst [vmem:[#allocation7 + $0x428] sm:$0xff] %v689
    %948 = vst [vmem:[#allocation7 + $0x430] sm:$0xff] %v690
    %949 = vst [vmem:[#allocation7 + $0x438] sm:$0xff] %v691
    %950 = vst [vmem:[#allocation7 + $0x440] sm:$0xff] %v692
    %951 = vst [vmem:[#allocation7 + $0x448] sm:$0xff] %v693
    %952 = vst [vmem:[#allocation7 + $0x450] sm:$0xff] %v694
    %953 = vst [vmem:[#allocation7 + $0x458] sm:$0xff] %v695
    %954 = vst [vmem:[#allocation7 + $0x460] sm:$0xff] %v696
    %955 = vst [vmem:[#allocation7 + $0x468] sm:$0xff] %v697
    %956 = vst [vmem:[#allocation7 + $0x470] sm:$0xff] %v698
    %957 = vst [vmem:[#allocation7 + $0x478] sm:$0xff] %v699
    %958 = vst [vmem:[#allocation7 + $0x480] sm:$0xff] %v700
    %959 = vst [vmem:[#allocation7 + $0x488] sm:$0xff] %v701
    %960 = vst [vmem:[#allocation7 + $0x490] sm:$0xff] %v702
    %961 = vst [vmem:[#allocation7 + $0x498] sm:$0xff] %v703
    %962 = vst [vmem:[#allocation7 + $0x4a0] sm:$0xff] %v704
    %963 = vst [vmem:[#allocation7 + $0x4a8] sm:$0xff] %v705
    %964 = vst [vmem:[#allocation7 + $0x4b0] sm:$0xff] %v706
    %965 = vst [vmem:[#allocation7 + $0x4b8] sm:$0xff] %v707
    %966 = vst [vmem:[#allocation7 + $0x4c0] sm:$0xff] %v708
    %967 = vst [vmem:[#allocation7 + $0x4c8] sm:$0xff] %v709
    %968 = vst [vmem:[#allocation7 + $0x4d0] sm:$0xff] %v710
    %969 = vst [vmem:[#allocation7 + $0x4d8] sm:$0xff] %v711
    %970 = vst [vmem:[#allocation7 + $0x4e0] sm:$0xff] %v712
    %971 = vst [vmem:[#allocation7 + $0x4e8] sm:$0xff] %v713
    %972 = vst [vmem:[#allocation7 + $0x4f0] sm:$0xff] %v714
    %973 = vst [vmem:[#allocation7 + $0x4f8] sm:$0xff] %v715
    %974 = vst [vmem:[#allocation7 + $0x500] sm:$0xff] %v716
    %975 = vst [vmem:[#allocation7 + $0x508] sm:$0xff] %v717
    %976 = vst [vmem:[#allocation7 + $0x510] sm:$0xff] %v718
    %977 = vst [vmem:[#allocation7 + $0x518] sm:$0xff] %v719
    %978 = vst [vmem:[#allocation7 + $0x520] sm:$0xff] %v720
    %979 = vst [vmem:[#allocation7 + $0x528] sm:$0xff] %v721
    %980 = vst [vmem:[#allocation7 + $0x530] sm:$0xff] %v722
    %981 = vst [vmem:[#allocation7 + $0x538] sm:$0xff] %v723
    %982 = vst [vmem:[#allocation7 + $0x540] sm:$0xff] %v724
    %983 = vst [vmem:[#allocation7 + $0x548] sm:$0xff] %v725
    %984 = vst [vmem:[#allocation7 + $0x550] sm:$0xff] %v726
    %985 = vst [vmem:[#allocation7 + $0x558] sm:$0xff] %v727
    %986 = vst [vmem:[#allocation7 + $0x560] sm:$0xff] %v728
    %987 = vst [vmem:[#allocation7 + $0x568] sm:$0xff] %v729
    %988 = vst [vmem:[#allocation7 + $0x570] sm:$0xff] %v730
    %989 = vst [vmem:[#allocation7 + $0x578] sm:$0xff] %v731
    %990 = vst [vmem:[#allocation7 + $0x580] sm:$0xff] %v732
    %991 = vst [vmem:[#allocation7 + $0x588] sm:$0xff] %v733
    %992 = vst [vmem:[#allocation7 + $0x590] sm:$0xff] %v734
    %993 = vst [vmem:[#allocation7 + $0x598] sm:$0xff] %v735
    %994 = vst [vmem:[#allocation7 + $0x5a0] sm:$0xff] %v736
    %995 = vst [vmem:[#allocation7 + $0x5a8] sm:$0xff] %v737
    %996 = vst [vmem:[#allocation7 + $0x5b0] sm:$0xff] %v738
    %997 = vst [vmem:[#allocation7 + $0x5b8] sm:$0xff] %v739
    %998 = vst [vmem:[#allocation7 + $0x5c0] sm:$0xff] %v740
    %999 = vst [vmem:[#allocation7 + $0x5c8] sm:$0xff] %v741
    %1000 = vst [vmem:[#allocation7 + $0x5d0] sm:$0xff] %v742
    %1001 = vst [vmem:[#allocation7 + $0x5d8] sm:$0xff] %v743
    %1002 = vst [vmem:[#allocation7 + $0x5e0] sm:$0xff] %v744
    %1003 = vst [vmem:[#allocation7 + $0x5e8] sm:$0xff] %v745
    %1004 = vst [vmem:[#allocation7 + $0x5f0] sm:$0xff] %v746
    %1005 = vst [vmem:[#allocation7 + $0x5f8] sm:$0xff] %v747
    %1006 = vst [vmem:[#allocation7 + $0x600] sm:$0xff] %v748
    %1007 = vst [vmem:[#allocation7 + $0x608] sm:$0xff] %v749
    %1008 = vst [vmem:[#allocation7 + $0x610] sm:$0xff] %v750
    %1009 = vst [vmem:[#allocation7 + $0x618] sm:$0xff] %v751
    %1010 = vst [vmem:[#allocation7 + $0x620] sm:$0xff] %v752
    %1011 = vst [vmem:[#allocation7 + $0x628] sm:$0xff] %v753
    %1012 = vst [vmem:[#allocation7 + $0x630] sm:$0xff] %v754
    %1013 = vst [vmem:[#allocation7 + $0x638] sm:$0xff] %v755
    %1014 = vst [vmem:[#allocation7 + $0x640] sm:$0xff] %v756
    %1015 = vst [vmem:[#allocation7 + $0x648] sm:$0xff] %v757
    %1016 = vst [vmem:[#allocation7 + $0x650] sm:$0xff] %v758
    %1017 = vst [vmem:[#allocation7 + $0x658] sm:$0xff] %v759
    %1018 = vst [vmem:[#allocation7 + $0x660] sm:$0xff] %v760
    %1019 = vst [vmem:[#allocation7 + $0x668] sm:$0xff] %v761
    %1020 = vst [vmem:[#allocation7 + $0x670] sm:$0xff] %v762
    %1021 = vst [vmem:[#allocation7 + $0x678] sm:$0xff] %v763
    %1022 = vst [vmem:[#allocation7 + $0x680] sm:$0xff] %v764
    %1023 = vst [vmem:[#allocation7 + $0x688] sm:$0xff] %v765
    %1024 = vst [vmem:[#allocation7 + $0x690] sm:$0xff] %v766
    %1025 = vst [vmem:[#allocation7 + $0x698] sm:$0xff] %v767
    %1026 = vst [vmem:[#allocation7 + $0x6a0] sm:$0xff] %v768
    %1027 = vst [vmem:[#allocation7 + $0x6a8] sm:$0xff] %v769
    %1028 = vst [vmem:[#allocation7 + $0x6b0] sm:$0xff] %v770
    %1029 = vst [vmem:[#allocation7 + $0x6b8] sm:$0xff] %v771
    %1030 = vst [vmem:[#allocation7 + $0x6c0] sm:$0xff] %v772
    %1031 = vst [vmem:[#allocation7 + $0x6c8] sm:$0xff] %v773
    %1032 = vst [vmem:[#allocation7 + $0x6d0] sm:$0xff] %v774
    %1033 = vst [vmem:[#allocation7 + $0x6d8] sm:$0xff] %v775
    %1034 = vst [vmem:[#allocation7 + $0x6e0] sm:$0xff] %v776
    %1035 = vst [vmem:[#allocation7 + $0x6e8] sm:$0xff] %v777
    %1036 = vst [vmem:[#allocation7 + $0x6f0] sm:$0xff] %v778
    %1037 = vst [vmem:[#allocation7 + $0x6f8] sm:$0xff] %v779
    %1038 = vst [vmem:[#allocation7 + $0x700] sm:$0xff] %v780
    %1039 = vst [vmem:[#allocation7 + $0x708] sm:$0xff] %v781
    %1040 = vst [vmem:[#allocation7 + $0x710] sm:$0xff] %v782
    %1041 = vst [vmem:[#allocation7 + $0x718] sm:$0xff] %v783
    %1042 = vst [vmem:[#allocation7 + $0x720] sm:$0xff] %v784
    %1043 = vst [vmem:[#allocation7 + $0x728] sm:$0xff] %v785
    %1044 = vst [vmem:[#allocation7 + $0x730] sm:$0xff] %v786
    %1045 = vst [vmem:[#allocation7 + $0x738] sm:$0xff] %v787
    %1046 = vst [vmem:[#allocation7 + $0x740] sm:$0xff] %v788
    %1047 = vst [vmem:[#allocation7 + $0x748] sm:$0xff] %v789
    %1048 = vst [vmem:[#allocation7 + $0x750] sm:$0xff] %v790
    %1049 = vst [vmem:[#allocation7 + $0x758] sm:$0xff] %v791
    %1050 = vst [vmem:[#allocation7 + $0x760] sm:$0xff] %v792
    %1051 = vst [vmem:[#allocation7 + $0x768] sm:$0xff] %v793
    %1052 = vst [vmem:[#allocation7 + $0x770] sm:$0xff] %v794
    %1053 = vst [vmem:[#allocation7 + $0x778] sm:$0xff] %v795
    %1054 = vst [vmem:[#allocation7 + $0x780] sm:$0xff] %v796
    %1055 = vst [vmem:[#allocation7 + $0x788] sm:$0xff] %v797
    %1056 = vst [vmem:[#allocation7 + $0x790] sm:$0xff] %v798
    %1057 = vst [vmem:[#allocation7 + $0x798] sm:$0xff] %v799
    %1058 = vst [vmem:[#allocation7 + $0x7a0] sm:$0xff] %v800
    %1059 = vst [vmem:[#allocation7 + $0x7a8] sm:$0xff] %v801
    %1060 = vst [vmem:[#allocation7 + $0x7b0] sm:$0xff] %v802
    %1061 = vst [vmem:[#allocation7 + $0x7b8] sm:$0xff] %v803
    %1062 = vst [vmem:[#allocation7 + $0x7c0] sm:$0xff] %v804
    %1063 = vst [vmem:[#allocation7 + $0x7c8] sm:$0xff] %v805
    %1064 = vst [vmem:[#allocation7 + $0x7d0] sm:$0xff] %v806
    %1065 = vst [vmem:[#allocation7 + $0x7d8] sm:$0xff] %v807
    %1066 = vst [vmem:[#allocation7 + $0x7e0] sm:$0xff] %v808
    %1067 = vst [vmem:[#allocation7 + $0x7e8] sm:$0xff] %v809
    %1068 = vst [vmem:[#allocation7 + $0x7f0] sm:$0xff] %v810
    %1069 = vst [vmem:[#allocation7 + $0x7f8] sm:$0xff] %v811
    %1070 = vst [vmem:[#allocation7 + $0x800] sm:$0xff] %v812
    %1071 = vst [vmem:[#allocation7 + $0x808] sm:$0x3] %v813
    // Predicated region
    $region18: #{tpu_custom_call.1} parent=1 // pred_check
      _
    $region19: #{tpu_custom_call.1} parent=1 // pred_check_branch
      %1073 = sbr.rel (0) target = $region21
    $region20: #{tpu_custom_call.1} parent=1 // pred_region
      %s1075 = ssub.s32 33024, 33024
      %1076 = vsyncadd [#allocation4], %s1075
      %s1077 = sshll.u32 [#allocation7], 4
      %s1078 = int_to_ptr.vmem [resolvable:$true] %s1077
      %1083 = dma.vmem_to_hbm [thread:$0]  %s1078, 33024, %s2, [#allocation4], 128, 128, 8
    $region21: #{tpu_custom_call.1} parent=1 // pred_fallthru
      _
    // Predicated region
    $region22: #{tpu_custom_call.1} parent=1 // pred_check
      _
    $region23: #{tpu_custom_call.1} parent=1 // pred_check_branch
      %1085 = sbr.rel (0) target = $region25
    $region24: #{tpu_custom_call.1} parent=1 // pred_region
      %1086 = dma.done [#allocation4], 33024
    $region25: #{tpu_custom_call.1} parent=1 // pred_fallthru
      _
    %1087 = vsyncpa [#allocation3], 1
    %1088 = vsyncpa [#allocation6], 1
    %1089 = vsyncpa [#allocation4], 1

</llo_original>
